<compile_context>
chip_gen: v6e
topology: v6e:2x2x1
jax: 0.10.0
libtpu: 0.0.40
codegen_flags: <defaults>
</compile_context>

<pallas_src>
import functools
import math

import jax
import jax.numpy as jnp
from jax.experimental import pallas as pl
from jax.experimental.pallas import tpu as pltpu


def _mem_kernel(x_ref, wt_ref, w_ref, out_ref, att_ref, *, shrink_thres):
    # x_ref:  (TILE_B, fea) bf16   wt_ref: (fea, mem) bf16   w_ref: (mem, fea) bf16
    # out_ref:(TILE_B, fea) f32    att_ref:(TILE_B, mem) f32
    x = x_ref[...]

    # att_logits = x @ M.T   (MXU, bf16 operands, f32 accumulation)
    logits = jnp.dot(x, wt_ref[...], preferred_element_type=jnp.float32)

    # softmax over the memory axis (f32, numerically stable)
    m = jnp.max(logits, axis=-1, keepdims=True)
    e = jnp.exp(logits - m)
    att = e / jnp.sum(e, axis=-1, keepdims=True)

    # hard_shrink_relu(att, lambd=shrink_thres, eps=1e-12)
    shifted = att - shrink_thres
    att = jnp.maximum(shifted, 0.0) * att / (jnp.abs(shifted) + 1e-12)

    # F.normalize(p=1, dim=1): att / max(||att||_1, 1e-12)
    l1 = jnp.sum(jnp.abs(att), axis=-1, keepdims=True)
    att = att / jnp.maximum(l1, 1e-12)

    att_ref[...] = att.astype(att_ref.dtype)
    # y = att @ M   (MXU, bf16 operands, f32 accumulation)
    out_ref[...] = jnp.dot(att.astype(w_ref.dtype), w_ref[...],
                           preferred_element_type=jnp.float32).astype(out_ref.dtype)


def mem_module_forward(x, weight, *, shrink_thres=0.0025, tile_b=128,
                       operand_dtype=jnp.bfloat16):
    """x: (B, fea_dim) f32, weight: (mem_dim, fea_dim) f32. Returns {'output', 'att'}."""
    B, fea_dim = x.shape
    mem_dim = weight.shape[0]

    tile_b = min(tile_b, B)
    assert B % tile_b == 0 and tile_b % 8 == 0, "batch tile must divide B and be a mult of 8"
    grid = (B // tile_b,)

    # bf16 matmul operands halve x/weight DMA bytes; accumulation stays f32 on the MXU.
    x_op = x.astype(operand_dtype)
    w = weight.astype(operand_dtype)     # (mem, fea)  for att @ M
    w_t = jnp.transpose(w)               # (fea, mem)  for x @ M.T (one-time XLA transpose)

    bpe = jnp.dtype(operand_dtype).itemsize
    cost = pl.CostEstimate(
        flops=4 * B * fea_dim * mem_dim,                      # two matmuls
        transcendentals=B * mem_dim,                          # exp in softmax
        bytes_accessed=(B * fea_dim * bpe + 2 * mem_dim * fea_dim * bpe
                        + B * fea_dim * 4 + B * mem_dim * 4),
    )

    out, att = pl.pallas_call(
        functools.partial(_mem_kernel, shrink_thres=shrink_thres),
        out_shape=(jax.ShapeDtypeStruct((B, fea_dim), jnp.float32),
                   jax.ShapeDtypeStruct((B, mem_dim), jnp.float32)),
        grid_spec=pltpu.PrefetchScalarGridSpec(
            num_scalar_prefetch=0,
            grid=grid,
            in_specs=[
                pl.BlockSpec((tile_b, fea_dim), lambda i: (i, 0)),    # x: tiled over batch
                pl.BlockSpec((fea_dim, mem_dim), lambda i: (0, 0)),   # M.T: VMEM-resident
                pl.BlockSpec((mem_dim, fea_dim), lambda i: (0, 0)),   # M:   VMEM-resident
            ],
            out_specs=(
                pl.BlockSpec((tile_b, fea_dim), lambda i: (i, 0)),    # output
                pl.BlockSpec((tile_b, mem_dim), lambda i: (i, 0)),    # att
            ),
        ),
        compiler_params=pltpu.CompilerParams(dimension_semantics=("parallel",)),
        cost_estimate=cost,
    )(x_op, w_t, w)
    return {"output": out, "att": att}


def reference_forward(x, weight, shrink_thres=0.0025, operand_dtype=jnp.bfloat16):
    """Pure-JAX reference using the same bf16-operand / f32-accumulate choice."""
    xb = x.astype(operand_dtype)
    wb = weight.astype(operand_dtype)
    logits = jnp.dot(xb, wb.T, preferred_element_type=jnp.float32)
    m = jnp.max(logits, axis=-1, keepdims=True)
    e = jnp.exp(logits - m)
    att = e / jnp.sum(e, axis=-1, keepdims=True)
    shifted = att - shrink_thres
    att = jnp.maximum(shifted, 0.0) * att / (jnp.abs(shifted) + 1e-12)
    att = att / jnp.maximum(jnp.sum(jnp.abs(att), axis=-1, keepdims=True), 1e-12)
    y = jnp.dot(att.astype(operand_dtype), wb, preferred_element_type=jnp.float32)
    return y, att


if __name__ == "__main__":
    batch, mem_dim, fea_dim = 128, 256, 128   # lane-dense: fea/mem are multiples of 128
    shrink_thres = 0.0025

    key = jax.random.PRNGKey(0)
    kx, kw = jax.random.split(key)
    x = jax.random.normal(kx, (batch, fea_dim), jnp.float32)
    stdv = 1.0 / math.sqrt(fea_dim)           # matches MemoryUnit.reset_parameters
    weight = jax.random.uniform(kw, (mem_dim, fea_dim), jnp.float32, -stdv, stdv)

    res = mem_module_forward(x, weight, shrink_thres=shrink_thres, tile_b=64)
    jax.block_until_ready(res)

    ref_y, ref_att = reference_forward(x, weight, shrink_thres)
    assert res["output"].shape == (batch, fea_dim)
    assert res["att"].shape == (batch, mem_dim)
    # Tolerances cover bf16 matmul operands and the (rare) case where an attention
    # value lands within float noise of the hard-shrink threshold.
    assert jnp.allclose(res["att"], ref_att, atol=5e-3, rtol=0), \
        float(jnp.max(jnp.abs(res["att"] - ref_att)))
    assert jnp.allclose(res["output"], ref_y, atol=1e-3, rtol=0), \
        float(jnp.max(jnp.abs(res["output"] - ref_y)))
    print("KERNEL_OK")
</pallas_src>

<mosaic_0001>
module attributes {stable_mosaic.version = 11 : i64} {
  func.func @_mem_kernel(%arg0: i32, %arg1: memref<64x128xbf16, #tpu.memory_space<vmem>>, %arg2: memref<128x256xbf16, #tpu.memory_space<vmem>>, %arg3: memref<256x128xbf16, #tpu.memory_space<vmem>>, %arg4: memref<64x128xf32, #tpu.memory_space<vmem>>, %arg5: memref<64x256xf32, #tpu.memory_space<vmem>>) attributes {dimension_semantics = [#tpu.dimension_semantics<parallel>], iteration_bounds = array<i64: 2>, scalar_prefetch = 0 : i64, scratch_operands = 0 : i64, tpu.core_type = #tpu.core_type<tc>, window_params = [{transform_indices = @transform_0, window_bounds = array<i64: 64, 128>}, {pipeline_mode = #tpu.pipeline_mode<synchronous>, transform_indices = @transform_1, window_bounds = array<i64: 128, 256>}, {pipeline_mode = #tpu.pipeline_mode<synchronous>, transform_indices = @transform_2, window_bounds = array<i64: 256, 128>}, {transform_indices = @transform_3, window_bounds = array<i64: 64, 128>}, {transform_indices = @transform_4, window_bounds = array<i64: 64, 256>}]} {
    %c0 = arith.constant 0 : index
    %c0_0 = arith.constant 0 : index
    %0 = vector.load %arg1[%c0, %c0_0] : memref<64x128xbf16, #tpu.memory_space<vmem>>, vector<64x128xbf16>
    %c0_1 = arith.constant 0 : index
    %c0_2 = arith.constant 0 : index
    %1 = vector.load %arg2[%c0_1, %c0_2] : memref<128x256xbf16, #tpu.memory_space<vmem>>, vector<128x256xbf16>
    %cst = arith.constant dense<0.000000e+00> : vector<64x256xf32>
    %2 = tpu.matmul %0, %1, %cst {dimension_numbers = #tpu.dot_dimension_numbers<[1], [0], [0], [1], [0, 0, 1, 1], [], []>} : vector<64x128xbf16>, vector<128x256xbf16>, vector<64x256xf32> -> vector<64x256xf32>
    %cst_3 = arith.constant dense<0xFF800000> : vector<64xf32>
    %3 = vector.multi_reduction <maximumf>, %2, %cst_3 [1] : vector<64x256xf32> to vector<64xf32>
    %4 = vector.shape_cast %3 : vector<64xf32> to vector<64x1xf32>
    %5 = vector.broadcast %4 : vector<64x1xf32> to vector<64x256xf32>
    %6 = arith.subf %2, %5 : vector<64x256xf32>
    %7 = math.exp %6 : vector<64x256xf32>
    %cst_4 = arith.constant dense<0.000000e+00> : vector<64xf32>
    %8 = vector.multi_reduction <add>, %7, %cst_4 [1] : vector<64x256xf32> to vector<64xf32>
    %9 = vector.shape_cast %8 : vector<64xf32> to vector<64x1xf32>
    %10 = vector.broadcast %9 : vector<64x1xf32> to vector<64x256xf32>
    %11 = arith.divf %7, %10 : vector<64x256xf32>
    %cst_5 = arith.constant 2.500000e-03 : f32
    %12 = vector.broadcast %cst_5 : f32 to vector<64x256xf32>
    %13 = arith.subf %11, %12 : vector<64x256xf32>
    %cst_6 = arith.constant 0.000000e+00 : f32
    %14 = vector.broadcast %cst_6 : f32 to vector<64x256xf32>
    %15 = arith.maximumf %13, %14 : vector<64x256xf32>
    %16 = arith.mulf %15, %11 : vector<64x256xf32>
    %17 = math.absf %13 : vector<64x256xf32>
    %cst_7 = arith.constant 9.99999996E-13 : f32
    %18 = vector.broadcast %cst_7 : f32 to vector<64x256xf32>
    %19 = arith.addf %17, %18 : vector<64x256xf32>
    %20 = arith.divf %16, %19 : vector<64x256xf32>
    %21 = math.absf %20 : vector<64x256xf32>
    %cst_8 = arith.constant dense<0.000000e+00> : vector<64xf32>
    %22 = vector.multi_reduction <add>, %21, %cst_8 [1] : vector<64x256xf32> to vector<64xf32>
    %23 = vector.shape_cast %22 : vector<64xf32> to vector<64x1xf32>
    %cst_9 = arith.constant 9.99999996E-13 : f32
    %24 = vector.broadcast %cst_9 : f32 to vector<64x1xf32>
    %25 = arith.maximumf %23, %24 : vector<64x1xf32>
    %26 = vector.broadcast %25 : vector<64x1xf32> to vector<64x256xf32>
    %27 = arith.divf %20, %26 : vector<64x256xf32>
    %c0_10 = arith.constant 0 : index
    %c0_11 = arith.constant 0 : index
    %28 = vector.load %arg5[%c0_10, %c0_11] : memref<64x256xf32, #tpu.memory_space<vmem>>, vector<64x256xf32>
    tpu.vector_store %arg5[%c0_10, %c0_11], %27 {strides = array<i32>} : memref<64x256xf32, #tpu.memory_space<vmem>>, vector<64x256xf32>,
    %29 = arith.truncf %27 : vector<64x256xf32> to vector<64x256xbf16>
    %c0_12 = arith.constant 0 : index
    %c0_13 = arith.constant 0 : index
    %30 = vector.load %arg3[%c0_12, %c0_13] : memref<256x128xbf16, #tpu.memory_space<vmem>>, vector<256x128xbf16>
    %cst_14 = arith.constant dense<0.000000e+00> : vector<64x128xf32>
    %31 = tpu.matmul %29, %30, %cst_14 {dimension_numbers = #tpu.dot_dimension_numbers<[1], [0], [0], [1], [0, 0, 1, 1], [], []>} : vector<64x256xbf16>, vector<256x128xbf16>, vector<64x128xf32> -> vector<64x128xf32>
    %c0_15 = arith.constant 0 : index
    %c0_16 = arith.constant 0 : index
    %32 = vector.load %arg4[%c0_15, %c0_16] : memref<64x128xf32, #tpu.memory_space<vmem>>, vector<64x128xf32>
    tpu.vector_store %arg4[%c0_15, %c0_16], %31 {strides = array<i32>} : memref<64x128xf32, #tpu.memory_space<vmem>>, vector<64x128xf32>,
    return
  }
  func.func @transform_0(%arg0: i32) -> (i32, i32) {
    %c0_i32 = arith.constant 0 : i32
    %c0_i32_0 = arith.constant 0 : i32
    return %arg0, %c0_i32 : i32, i32
  }
  func.func @transform_1(%arg0: i32) -> (i32, i32) {
    %c0_i32 = arith.constant 0 : i32
    %c0_i32_0 = arith.constant 0 : i32
    %c0_i32_1 = arith.constant 0 : i32
    return %c0_i32, %c0_i32_0 : i32, i32
  }
  func.func @transform_2(%arg0: i32) -> (i32, i32) {
    %c0_i32 = arith.constant 0 : i32
    %c0_i32_0 = arith.constant 0 : i32
    %c0_i32_1 = arith.constant 0 : i32
    return %c0_i32, %c0_i32_0 : i32, i32
  }
  func.func @transform_3(%arg0: i32) -> (i32, i32) {
    %c0_i32 = arith.constant 0 : i32
    %c0_i32_0 = arith.constant 0 : i32
    return %arg0, %c0_i32 : i32, i32
  }
  func.func @transform_4(%arg0: i32) -> (i32, i32) {
    %c0_i32 = arith.constant 0 : i32
    %c0_i32_0 = arith.constant 0 : i32
    return %arg0, %c0_i32 : i32, i32
  }
}

</mosaic_0001>

<llo_original>
// kernel: tpu_custom_call.1
$region0: #{tpu_custom_call.1}
  #allocation0 [shape = 'u32[]', space=smem, size = 0x4, offset = 0x4, fixed_abs, tag = 'smem constant byte address 0x4 - core index']
  #allocation1 [shape = 'u32[144,128]{1,0:T(1,128)}', space=vmem, size = 0x12000, scoped, tag = 'internal scratch']
  %s0 = inlined_call_operand.hbm [shape: bf16[128,128], index: 0, kind: input, shape index: {}]
  %s1 = inlined_call_operand.hbm [shape: bf16[128,256], index: 1, kind: input, shape index: {}]
  %s2 = inlined_call_operand.hbm [shape: bf16[256,128], index: 2, kind: input, shape index: {}]
  %s3 = inlined_call_operand.hbm [shape: f32[128,128], index: 3, kind: output, shape index: {0}]
  %s4 = inlined_call_operand.hbm [shape: f32[128,256], index: 4, kind: output, shape index: {1}]
  %5 = xla_tuple %s3, %s4
  %s6 = sld [smem:[#allocation0]]
  $region65: #{tpu_custom_call.1} parent=0
    _
  %s8 = ssub.s32 1, %s6
  %s9 = scalar_select 0, %s8, %s6
  $region1: #{tpu_custom_call.1} parent=0
    #allocation2 [shape = 'u8[32768]{0}', space=vmem, size = 0x8000, scoped, tag = 'input window, operand 0']
    #allocation3 [shape = 's32[2]{0}', space=sflag, size = 0x8, scoped, tag = 'scoped memory for tpu_custom_call.1']
    #allocation4 [shape = 's32[2]{0}', space=sflag, size = 0x8, scoped, tag = 'scoped memory for tpu_custom_call.1']
    #allocation5 [shape = 'u8[65536]{0}', space=vmem, size = 0x10000, scoped, tag = 'input window, operand 1, single buffered']
    #allocation6 [shape = 's32[1]{0}', space=sflag, size = 0x4, scoped, tag = 'scoped memory for tpu_custom_call.1']
    #allocation7 [shape = 'u8[65536]{0}', space=vmem, size = 0x10000, scoped, tag = 'input window, operand 2, single buffered']
    #allocation8 [shape = 'u8[65536]{0}', space=vmem, size = 0x10000, scoped, tag = 'output window, operand 0']
    #allocation9 [shape = 'u8[131072]{0}', space=vmem, size = 0x20000, scoped, tag = 'output window, operand 1']
    #allocation10 [shape = 's32[2]{0}', space=sflag, size = 0x8, scoped, tag = 'scoped memory for tpu_custom_call.1']
    %10 = vsyncpa [#allocation3], 0
    %s11 = scalar_lea.sflag [#allocation3], 1
    %12 = vsyncpa %s11, 0
    %13 = vsyncpa [#allocation6], 0
    %14 = vsyncpa [#allocation4], 0
    %s15 = scalar_lea.sflag [#allocation4], 1
    %16 = vsyncpa %s15, 0
    %17 = vsyncpa [#allocation10], 0
    %s18 = scalar_lea.sflag [#allocation10], 1
    %19 = vsyncpa %s18, 0
    loop: start=0, step=1, limit=4
    $region2: #{tpu_custom_call.1} parent=1 // loop_pre_header
      _
    $region3: #{tpu_custom_call.1} parent=1 // loop_header
      %s21 = sphi 0, %s25
      %p22 = scmp.ge.s32.totalorder %s21, 4
      %s31 = sphi 0, %s33
      %s34 = sphi 0, %s31
      %s35 = sphi 0, %s34
      %s51 = sphi 0, %s35
      %s55 = sphi 0, %s55
      %s57 = sphi 0, %s55
      %s58 = sphi 0, %s57
      %s72 = sphi 0, %s58
      %s76 = sphi 0, %s76
      %s78 = sphi 0, %s76
      %s79 = sphi 0, %s78
      %s93 = sphi 0, %s79
      %s99 = sphi 0, %s101
      %s102 = sphi 0, %s99
      %s103 = sphi 0, %s102
      %s119 = sphi 0, %s103
      %s125 = sphi 0, %s127
      %s128 = sphi 0, %s125
      %s129 = sphi 0, %s128
      %s145 = sphi 0, %s129
    $region4: #{tpu_custom_call.1} parent=1 // loop_header_branch
      %24 = sbr.rel (%p22) target = $region8
    $region5: #{tpu_custom_call.1} parent=1 // loop_body
      %s26 = ssub.s32 %s21, 1
      %s27 = ssub.s32 %s21, 2
      %s28 = sadd.s32 %s21, 1
      %s29 = ssub.s32 %s21, %s28
      %p30 = scmp.eq.s32.totalorder %s29, 0
      %s32 = sadd.s32 %s31, 1
      %s33 = scalar_select %p30, %s31, %s32
      %p36 = pneg %p30
      %p37 = scmp.eq.s32.totalorder %s21, 1
      %p38 = por %p36, %p37
      %p39 = scmp.ne.s32.totalorder %s31, %s34
      %p40 = scmp.eq.s32.totalorder %s21, 0
      %p41 = por %p39, %p40
      %p42 = scmp.ne.s32.totalorder %s31, %s34
      %p43 = scmp.eq.s32.totalorder %s26, 1
      %p44 = por %p42, %p43
      %p45 = scmp.ne.s32.totalorder %s34, %s35
      %p46 = scmp.eq.s32.totalorder %s26, 0
      %p47 = por %p45, %p46
      %p48 = scmp.ne.s32.totalorder %s34, %s35
      %p49 = scmp.eq.s32.totalorder %s27, 1
      %p50 = por %p48, %p49
      %p52 = scmp.ne.s32.totalorder %s35, %s51
      %p53 = scmp.eq.s32.totalorder %s27, 0
      %p54 = por %p52, %p53
      %s56 = sadd.s32 %s55, 1
      %p59 = scmp.eq.s32.totalorder %s21, 1
      %p60 = scmp.ne.s32.totalorder %s55, %s57
      %p61 = scmp.eq.s32.totalorder %s21, 0
      %p62 = por %p60, %p61
      %p63 = scmp.ne.s32.totalorder %s55, %s57
      %p64 = scmp.eq.s32.totalorder %s26, 1
      %p65 = por %p63, %p64
      %p66 = scmp.ne.s32.totalorder %s57, %s58
      %p67 = scmp.eq.s32.totalorder %s26, 0
      %p68 = por %p66, %p67
      %p69 = scmp.ne.s32.totalorder %s57, %s58
      %p70 = scmp.eq.s32.totalorder %s27, 1
      %p71 = por %p69, %p70
      %p73 = scmp.ne.s32.totalorder %s58, %s72
      %p74 = scmp.eq.s32.totalorder %s27, 0
      %p75 = por %p73, %p74
      %s77 = sadd.s32 %s76, 1
      %p80 = scmp.eq.s32.totalorder %s21, 1
      %p81 = scmp.ne.s32.totalorder %s76, %s78
      %p82 = scmp.eq.s32.totalorder %s21, 0
      %p83 = por %p81, %p82
      %p84 = scmp.ne.s32.totalorder %s76, %s78
      %p85 = scmp.eq.s32.totalorder %s26, 1
      %p86 = por %p84, %p85
      %p87 = scmp.ne.s32.totalorder %s78, %s79
      %p88 = scmp.eq.s32.totalorder %s26, 0
      %p89 = por %p87, %p88
      %p90 = scmp.ne.s32.totalorder %s78, %s79
      %p91 = scmp.eq.s32.totalorder %s27, 1
      %p92 = por %p90, %p91
      %p94 = scmp.ne.s32.totalorder %s79, %s93
      %p95 = scmp.eq.s32.totalorder %s27, 0
      %p96 = por %p94, %p95
      %s97 = ssub.s32 %s21, %s28
      %p98 = scmp.eq.s32.totalorder %s97, 0
      %s100 = sadd.s32 %s99, 1
      %s101 = scalar_select %p98, %s99, %s100
      %p104 = pneg %p98
      %p105 = scmp.eq.s32.totalorder %s21, 1
      %p106 = por %p104, %p105
      %p107 = scmp.ne.s32.totalorder %s99, %s102
      %p108 = scmp.eq.s32.totalorder %s21, 0
      %p109 = por %p107, %p108
      %p110 = scmp.ne.s32.totalorder %s99, %s102
      %p111 = scmp.eq.s32.totalorder %s26, 1
      %p112 = por %p110, %p111
      %p113 = scmp.ne.s32.totalorder %s102, %s103
      %p114 = scmp.eq.s32.totalorder %s26, 0
      %p115 = por %p113, %p114
      %p116 = scmp.ne.s32.totalorder %s102, %s103
      %p117 = scmp.eq.s32.totalorder %s27, 1
      %p118 = por %p116, %p117
      %p120 = scmp.ne.s32.totalorder %s103, %s119
      %p121 = scmp.eq.s32.totalorder %s27, 0
      %p122 = por %p120, %p121
      %s123 = ssub.s32 %s21, %s28
      %p124 = scmp.eq.s32.totalorder %s123, 0
      %s126 = sadd.s32 %s125, 1
      %s127 = scalar_select %p124, %s125, %s126
      %p130 = pneg %p124
      %p131 = scmp.eq.s32.totalorder %s21, 1
      %p132 = por %p130, %p131
      %p133 = scmp.ne.s32.totalorder %s125, %s128
      %p134 = scmp.eq.s32.totalorder %s21, 0
      %p135 = por %p133, %p134
      %p136 = scmp.ne.s32.totalorder %s125, %s128
      %p137 = scmp.eq.s32.totalorder %s26, 1
      %p138 = por %p136, %p137
      %p139 = scmp.ne.s32.totalorder %s128, %s129
      %p140 = scmp.eq.s32.totalorder %s26, 0
      %p141 = por %p139, %p140
      %p142 = scmp.ne.s32.totalorder %s128, %s129
      %p143 = scmp.eq.s32.totalorder %s27, 1
      %p144 = por %p142, %p143
      %p146 = scmp.ne.s32.totalorder %s129, %s145
      %p147 = scmp.eq.s32.totalorder %s27, 0
      %p148 = por %p146, %p147
      %p149 = scmp.le.s32.totalorder 1, %s21
      %p150 = scmp.lt.s32.totalorder %s21, 3
      %p151 = pnand %p149, %p150
      %p152 = pneg %p151
      // Predicated region
      $region9: #{tpu_custom_call.1} parent=5 // pred_check
        _
      $region10: #{tpu_custom_call.1} parent=5 // pred_check_branch
        %154 = sbr.rel (%p151) target = $region12
      $region11: #{tpu_custom_call.1} parent=5 // pred_region
        %s155 = ssub.s32 %s21, 1
        // Predicated region
        $region13: #{tpu_custom_call.1} parent=11 // pred_check
          %p156 = pneg %p68
        $region14: #{tpu_custom_call.1} parent=11 // pred_check_branch
          %158 = sbr.rel (%p156) target = $region16
        $region15: #{tpu_custom_call.1} parent=11 // pred_region
          %s160 = ssub.s32 2048, 2048
          %161 = vsyncadd [#allocation6], %s160
          %s162 = sshll.u32 [#allocation5], 4
          %s163 = int_to_ptr.vmem [resolvable:$true] %s162
          %168 = dma.hbm_to_vmem [thread:$0]  %s1, 2048, %s163, [#allocation6], 128, 128, 8
        $region16: #{tpu_custom_call.1} parent=11 // pred_fallthru
          _
        // Predicated region
        $region17: #{tpu_custom_call.1} parent=11 // pred_check
          %p169 = pneg %p89
        $region18: #{tpu_custom_call.1} parent=11 // pred_check_branch
          %171 = sbr.rel (%p169) target = $region20
        $region19: #{tpu_custom_call.1} parent=11 // pred_region
          %s173 = ssub.s32 2048, 2048
          %174 = vsyncadd [#allocation6], %s173
          %s175 = sshll.u32 [#allocation7], 4
          %s176 = int_to_ptr.vmem [resolvable:$true] %s175
          %181 = dma.hbm_to_vmem [thread:$0]  %s2, 2048, %s176, [#allocation6], 64, 64, 4
        $region20: #{tpu_custom_call.1} parent=11 // pred_fallthru
          _
      $region12: #{tpu_custom_call.1} parent=5 // pred_fallthru
        _
      %p182 = scmp.lt.s32.totalorder %s21, 2
      // Predicated region
      $region21: #{tpu_custom_call.1} parent=5 // pred_check
        %p183 = pneg %p182
      $region22: #{tpu_custom_call.1} parent=5 // pred_check_branch
        %185 = sbr.rel (%p183) target = $region24
      $region23: #{tpu_custom_call.1} parent=5 // pred_region
        // Predicated region
        $region25: #{tpu_custom_call.1} parent=23 // pred_check
          %p186 = pneg %p41
        $region26: #{tpu_custom_call.1} parent=23 // pred_check_branch
          %188 = sbr.rel (%p186) target = $region28
        $region27: #{tpu_custom_call.1} parent=23 // pred_region
          %s189 = sand.u32 %s31, 1
          %s190 = scalar_lea.sflag [#allocation3], %s189
          %s191 = sand.u32 %s31, 1
          %s192 = smul.addr %s191, 32
          %s193 = scalar_lea.vmem [#allocation2], %s192
          %s194 = smul.u32 8, %s21
          %s196 = ssub.s32 512, 512
          %197 = vsyncadd %s190, %s196
          %s198 = smul.addr %s194, 64
          %s199 = scalar_lea.hbm %s0, %s198
          %s200 = sshll.u32 %s193, 4
          %s201 = int_to_ptr.vmem [resolvable:$true] %s200
          %206 = dma.hbm_to_vmem [thread:$0]  %s199, 512, %s201, %s190, 64, 64, 4
        $region28: #{tpu_custom_call.1} parent=23 // pred_fallthru
          _
      $region24: #{tpu_custom_call.1} parent=5 // pred_fallthru
        _
      %p207 = scmp.le.s32.totalorder 1, %s21
      %p208 = scmp.lt.s32.totalorder %s21, 3
      %p209 = pnand %p207, %p208
      %p210 = pneg %p209
      // Predicated region
      $region29: #{tpu_custom_call.1} parent=5 // pred_check
        _
      $region30: #{tpu_custom_call.1} parent=5 // pred_check_branch
        %212 = sbr.rel (%p209) target = $region32
      $region31: #{tpu_custom_call.1} parent=5 // pred_region
        %s213 = ssub.s32 %s21, 1
        %s214 = sand.u32 %s34, 1
        %s215 = scalar_lea.sflag [#allocation3], %s214
        %s216 = sand.u32 %s34, 1
        %s217 = smul.addr %s216, 32
        %s218 = scalar_lea.vmem [#allocation2], %s217
        // Predicated region
        $region33: #{tpu_custom_call.1} parent=31 // pred_check
          %p219 = pneg %p47
        $region34: #{tpu_custom_call.1} parent=31 // pred_check_branch
          %221 = sbr.rel (%p219) target = $region36
        $region35: #{tpu_custom_call.1} parent=31 // pred_region
          %222 = dma.done %s215, 512
        $region36: #{tpu_custom_call.1} parent=31 // pred_fallthru
          _
        // Predicated region
        $region37: #{tpu_custom_call.1} parent=31 // pred_check
          %p223 = pneg %p68
        $region38: #{tpu_custom_call.1} parent=31 // pred_check_branch
          %225 = sbr.rel (%p223) target = $region40
        $region39: #{tpu_custom_call.1} parent=31 // pred_region
          %226 = dma.done [#allocation6], 2048
        $region40: #{tpu_custom_call.1} parent=31 // pred_fallthru
          _
        // Predicated region
        $region41: #{tpu_custom_call.1} parent=31 // pred_check
          %p227 = pneg %p89
        $region42: #{tpu_custom_call.1} parent=31 // pred_check_branch
          %229 = sbr.rel (%p227) target = $region44
        $region43: #{tpu_custom_call.1} parent=31 // pred_region
          %230 = dma.done [#allocation6], 2048
        $region44: #{tpu_custom_call.1} parent=31 // pred_fallthru
          _
        %s231 = sand.u32 %s34, 1
        %s232 = scalar_lea.sflag [#allocation3], %s231
        %s233 = sand.u32 %s34, 1
        %s234 = smul.addr %s233, 32
        %s235 = scalar_lea.vmem [#allocation2], %s234
        %p236 = pneg %p47
        %p237 = pneg %p44
        %p238 = pneg %p68
        %p239 = pneg %p65
        %p240 = pneg %p89
        %p241 = pneg %p86
        %p242 = pneg %p115
        %p243 = pneg %p112
        %s244 = sand.u32 %s102, 1
        %s245 = scalar_lea.sflag [#allocation4], %s244
        %s246 = sand.u32 %s102, 1
        %s247 = smul.addr %s246, 64
        %s248 = scalar_lea.vmem [#allocation8], %s247
        %p249 = pneg %p141
        %p250 = pneg %p138
        %s251 = sand.u32 %s128, 1
        %s252 = scalar_lea.sflag [#allocation10], %s251
        %s253 = sand.u32 %s128, 1
        %s254 = smul.addr %s253, 128
        %s255 = scalar_lea.vmem [#allocation9], %s254
        %s256 = smul.u32 8, %s26
        %s257 = smul.u32 8, %s26
        %s258 = smul.u32 8, %s26
        %v260 = vld [vmem:[%s218] sm:$0xf]
        %v261 = vld [vmem:[%s218 + $0x4] sm:$0xf]
        %v262 = vld [vmem:[%s218 + $0x8] sm:$0xf]
        %v263 = vld [vmem:[%s218 + $0xc] sm:$0xf]
        %v264 = vld [vmem:[%s218 + $0x10] sm:$0xf]
        %v265 = vld [vmem:[%s218 + $0x14] sm:$0xf]
        %v266 = vld [vmem:[%s218 + $0x18] sm:$0xf]
        %v267 = vld [vmem:[%s218 + $0x1c] sm:$0xf]
        %v268 = vld [vmem:[#allocation5] sm:$0xff]
        %v269 = vld [vmem:[#allocation5 + $0x8] sm:$0xff]
        %v270 = vld [vmem:[#allocation5 + $0x10] sm:$0xff]
        %v271 = vld [vmem:[#allocation5 + $0x18] sm:$0xff]
        %v272 = vld [vmem:[#allocation5 + $0x20] sm:$0xff]
        %v273 = vld [vmem:[#allocation5 + $0x28] sm:$0xff]
        %v274 = vld [vmem:[#allocation5 + $0x30] sm:$0xff]
        %v275 = vld [vmem:[#allocation5 + $0x38] sm:$0xff]
        %v276 = vld [vmem:[#allocation5 + $0x40] sm:$0xff]
        %v277 = vld [vmem:[#allocation5 + $0x48] sm:$0xff]
        %v278 = vld [vmem:[#allocation5 + $0x50] sm:$0xff]
        %v279 = vld [vmem:[#allocation5 + $0x58] sm:$0xff]
        %v280 = vld [vmem:[#allocation5 + $0x60] sm:$0xff]
        %v281 = vld [vmem:[#allocation5 + $0x68] sm:$0xff]
        %v282 = vld [vmem:[#allocation5 + $0x70] sm:$0xff]
        %v283 = vld [vmem:[#allocation5 + $0x78] sm:$0xff]
        %v292 = vunpack.c.l.b16 %v260
        %v293 = vunpack.c.l.b16 %v261
        %v294 = vunpack.c.l.b16 %v262
        %v295 = vunpack.c.l.b16 %v263
        %v296 = vunpack.c.l.b16 %v264
        %v297 = vunpack.c.l.b16 %v265
        %v298 = vunpack.c.l.b16 %v266
        %v299 = vunpack.c.l.b16 %v267
        %v300 = vpack.c.b16 %v293, %v292
        %v301 = vpack.c.b16 %v295, %v294
        %v302 = vpack.c.b16 %v297, %v296
        %v303 = vpack.c.b16 %v299, %v298
        %v324 = vunpack.c.l.b16 %v268
        %v325 = vunpack.c.h.b16 %v268
        %v326 = vunpack.c.l.b16 %v269
        %v327 = vunpack.c.h.b16 %v269
        %v328 = vunpack.c.l.b16 %v270
        %v329 = vunpack.c.h.b16 %v270
        %v330 = vunpack.c.l.b16 %v271
        %v331 = vunpack.c.h.b16 %v271
        %v332 = vunpack.c.l.b16 %v272
        %v333 = vunpack.c.h.b16 %v272
        %v334 = vunpack.c.l.b16 %v273
        %v335 = vunpack.c.h.b16 %v273
        %v336 = vunpack.c.l.b16 %v274
        %v337 = vunpack.c.h.b16 %v274
        %v338 = vunpack.c.l.b16 %v275
        %v339 = vunpack.c.h.b16 %v275
        %v340 = vunpack.c.l.b16 %v276
        %v341 = vunpack.c.h.b16 %v276
        %v342 = vunpack.c.l.b16 %v277
        %v343 = vunpack.c.h.b16 %v277
        %v344 = vunpack.c.l.b16 %v278
        %v345 = vunpack.c.h.b16 %v278
        %v346 = vunpack.c.l.b16 %v279
        %v347 = vunpack.c.h.b16 %v279
        %v348 = vunpack.c.l.b16 %v280
        %v349 = vunpack.c.h.b16 %v280
        %v350 = vunpack.c.l.b16 %v281
        %v351 = vunpack.c.h.b16 %v281
        %v352 = vunpack.c.l.b16 %v282
        %v353 = vunpack.c.h.b16 %v282
        %v354 = vunpack.c.l.b16 %v283
        %v355 = vunpack.c.h.b16 %v283
        %v356 = vpack.c.b16 %v326, %v324
        %v357 = vpack.c.b16 %v327, %v325
        %v358 = vpack.c.b16 %v330, %v328
        %v359 = vpack.c.b16 %v331, %v329
        %v360 = vpack.c.b16 %v334, %v332
        %v361 = vpack.c.b16 %v335, %v333
        %v362 = vpack.c.b16 %v338, %v336
        %v363 = vpack.c.b16 %v339, %v337
        %v364 = vpack.c.b16 %v342, %v340
        %v365 = vpack.c.b16 %v343, %v341
        %v366 = vpack.c.b16 %v346, %v344
        %v367 = vpack.c.b16 %v347, %v345
        %v368 = vpack.c.b16 %v350, %v348
        %v369 = vpack.c.b16 %v351, %v349
        %v370 = vpack.c.b16 %v354, %v352
        %v371 = vpack.c.b16 %v355, %v353
        %388 = vmatprep.subr.bf16.mxu0 %v371
        %389 = vmatpush1.bf16.msra.mxu0 %v370
        %390 = vmatprep.subr.bf16.mxu0 %v369
        %391 = vmatpush1.bf16.msra.mxu0 %v368
        %392 = vmatprep.subr.bf16.mxu0 %v367
        %393 = vmatpush1.bf16.msra.mxu0 %v366
        %394 = vmatprep.subr.bf16.mxu0 %v365
        %395 = vmatpush1.bf16.msra.mxu0 %v364
        %396 = vmatprep.subr.bf16.mxu0 %v363
        %397 = vmatpush1.bf16.msra.mxu0 %v362
        %398 = vmatprep.subr.bf16.mxu0 %v361
        %399 = vmatpush1.bf16.msra.mxu0 %v360
        %400 = vmatprep.subr.bf16.mxu0 %v359
        %401 = vmatpush1.bf16.msra.mxu0 %v358
        %402 = vmatprep.subr.bf16.mxu0 %v357
        %403 = vmatpush1.bf16.msra.mxu0 %v356
        %404 = vmatprep.subr.bf16.mxu0 0
        %405 = vmatpush2.bf16.msra.mxu0 0
        %406 = vmatprep.subr.bf16.mxu0 0
        %407 = vmatpush2.bf16.msra.mxu0 0
        %408 = vmatprep.subr.bf16.mxu0 0
        %409 = vmatpush2.bf16.msra.mxu0 0
        %410 = vmatprep.subr.bf16.mxu0 0
        %411 = vmatpush2.bf16.msra.mxu0 0
        %412 = vmatprep.subr.bf16.mxu0 0
        %413 = vmatpush2.bf16.msra.mxu0 0
        %414 = vmatprep.subr.bf16.mxu0 0
        %415 = vmatpush2.bf16.msra.mxu0 0
        %416 = vmatprep.subr.bf16.mxu0 0
        %417 = vmatpush2.bf16.msra.mxu0 0
        %418 = vmatprep.subr.bf16.mxu0 0
        %419 = vmatpush2.bf16.msra.mxu0 0
        %420 = vmatprep.mubr.bf16.mxu0 0
        %421 = vmatmul.mubr.bf16.gmra.mxu0 %v300
        %v422 = vpop.f32.mrf.mxu0
        %v423 = vadd.f32 0.0, %v422
        %v424 = vpop.f32.mrf.mxu0
        %v425 = vadd.f32 0.0, %v424
        %v426 = vpop.f32.mrf.mxu0
        %v427 = vadd.f32 0.0, %v426
        %v428 = vpop.f32.mrf.mxu0
        %v429 = vadd.f32 0.0, %v428
        %430 = vmatprep.mubr.bf16.mxu0 0
        %431 = vmatmul.mubr.bf16.gmra.mxu0 %v301
        %v432 = vpop.f32.mrf.mxu0
        %v433 = vadd.f32 0.0, %v432
        %v434 = vpop.f32.mrf.mxu0
        %v435 = vadd.f32 0.0, %v434
        %v436 = vpop.f32.mrf.mxu0
        %v437 = vadd.f32 0.0, %v436
        %v438 = vpop.f32.mrf.mxu0
        %v439 = vadd.f32 0.0, %v438
        %440 = vmatprep.mubr.bf16.mxu0 0
        %441 = vmatmul.mubr.bf16.gmra.mxu0 %v302
        %v442 = vpop.f32.mrf.mxu0
        %v443 = vadd.f32 0.0, %v442
        %v444 = vpop.f32.mrf.mxu0
        %v445 = vadd.f32 0.0, %v444
        %v446 = vpop.f32.mrf.mxu0
        %v447 = vadd.f32 0.0, %v446
        %v448 = vpop.f32.mrf.mxu0
        %v449 = vadd.f32 0.0, %v448
        %450 = vmatprep.mubr.bf16.mxu0 0
        %451 = vmatmul.mubr.bf16.gmra.mxu0 %v303
        %v452 = vpop.f32.mrf.mxu0
        %v453 = vadd.f32 0.0, %v452
        %v454 = vpop.f32.mrf.mxu0
        %v455 = vadd.f32 0.0, %v454
        %v456 = vpop.f32.mrf.mxu0
        %v457 = vadd.f32 0.0, %v456
        %v458 = vpop.f32.mrf.mxu0
        %v459 = vadd.f32 0.0, %v458
        %460 = vdwg.mxu0
        %v461 = vmax.f32 %v423, %v425
        %462 = vmax.xlane.f32.xlu0 %v461
        %v463 = vpop.xlane.xlu0 %462
        %v464 = vmax.f32 %v427, %v429
        %465 = vmax.xlane.f32.xlu0 %v464
        %v466 = vpop.xlane.xlu0 %465
        %v467 = vmax.f32 %v433, %v435
        %468 = vmax.xlane.f32.xlu0 %v467
        %v469 = vpop.xlane.xlu0 %468
        %v470 = vmax.f32 %v437, %v439
        %471 = vmax.xlane.f32.xlu0 %v470
        %v472 = vpop.xlane.xlu0 %471
        %v473 = vmax.f32 %v443, %v445
        %474 = vmax.xlane.f32.xlu0 %v473
        %v475 = vpop.xlane.xlu0 %474
        %v476 = vmax.f32 %v447, %v449
        %477 = vmax.xlane.f32.xlu0 %v476
        %v478 = vpop.xlane.xlu0 %477
        %v479 = vmax.f32 %v453, %v455
        %480 = vmax.xlane.f32.xlu0 %v479
        %v481 = vpop.xlane.xlu0 %480
        %v482 = vmax.f32 %v457, %v459
        %483 = vmax.xlane.f32.xlu0 %v482
        %v484 = vpop.xlane.xlu0 %483
        %v485 = vsub.f32 %v423, %v463
        %v486 = vsub.f32 %v425, %v463
        %v487 = vsub.f32 %v427, %v466
        %v488 = vsub.f32 %v429, %v466
        %v489 = vsub.f32 %v433, %v469
        %v490 = vsub.f32 %v435, %v469
        %v491 = vsub.f32 %v437, %v472
        %v492 = vsub.f32 %v439, %v472
        %v493 = vsub.f32 %v443, %v475
        %v494 = vsub.f32 %v445, %v475
        %v495 = vsub.f32 %v447, %v478
        %v496 = vsub.f32 %v449, %v478
        %v497 = vsub.f32 %v453, %v481
        %v498 = vsub.f32 %v455, %v481
        %v499 = vsub.f32 %v457, %v484
        %v500 = vsub.f32 %v459, %v484
        %v501 = vmul.f32 %v485, 1.442695
        %v502 = vpow.pop %v501
        %v503 = vmul.f32 %v486, 1.442695
        %v504 = vpow.pop %v503
        %v505 = vmul.f32 %v487, 1.442695
        %v506 = vpow.pop %v505
        %v507 = vmul.f32 %v488, 1.442695
        %v508 = vpow.pop %v507
        %v509 = vmul.f32 %v489, 1.442695
        %v510 = vpow.pop %v509
        %v511 = vmul.f32 %v490, 1.442695
        %v512 = vpow.pop %v511
        %v513 = vmul.f32 %v491, 1.442695
        %v514 = vpow.pop %v513
        %v515 = vmul.f32 %v492, 1.442695
        %v516 = vpow.pop %v515
        %v517 = vmul.f32 %v493, 1.442695
        %v518 = vpow.pop %v517
        %v519 = vmul.f32 %v494, 1.442695
        %v520 = vpow.pop %v519
        %v521 = vmul.f32 %v495, 1.442695
        %v522 = vpow.pop %v521
        %v523 = vmul.f32 %v496, 1.442695
        %v524 = vpow.pop %v523
        %v525 = vmul.f32 %v497, 1.442695
        %v526 = vpow.pop %v525
        %v527 = vmul.f32 %v498, 1.442695
        %v528 = vpow.pop %v527
        %v529 = vmul.f32 %v499, 1.442695
        %v530 = vpow.pop %v529
        %v531 = vmul.f32 %v500, 1.442695
        %v532 = vpow.pop %v531
        %v533 = vadd.f32 %v502, %v504
        %534 = vadd.xlane.f32.xlu0 %v533
        %v535 = vpop.xlane.xlu0 %534
        %v536 = vadd.f32 %v506, %v508
        %537 = vadd.xlane.f32.xlu0 %v536
        %v538 = vpop.xlane.xlu0 %537
        %v539 = vadd.f32 %v510, %v512
        %540 = vadd.xlane.f32.xlu0 %v539
        %v541 = vpop.xlane.xlu0 %540
        %v542 = vadd.f32 %v514, %v516
        %543 = vadd.xlane.f32.xlu0 %v542
        %v544 = vpop.xlane.xlu0 %543
        %v545 = vadd.f32 %v518, %v520
        %546 = vadd.xlane.f32.xlu0 %v545
        %v547 = vpop.xlane.xlu0 %546
        %v548 = vadd.f32 %v522, %v524
        %549 = vadd.xlane.f32.xlu0 %v548
        %v550 = vpop.xlane.xlu0 %549
        %v551 = vadd.f32 %v526, %v528
        %552 = vadd.xlane.f32.xlu0 %v551
        %v553 = vpop.xlane.xlu0 %552
        %v554 = vadd.f32 %v530, %v532
        %555 = vadd.xlane.f32.xlu0 %v554
        %v556 = vpop.xlane.xlu0 %555
        %v557 = vrcp.pop %v535
        %v558 = vmul.f32 %v502, %v557
        %v559 = vmul.f32 %v504, %v557
        %v560 = vrcp.pop %v538
        %v561 = vmul.f32 %v506, %v560
        %v562 = vmul.f32 %v508, %v560
        %v563 = vrcp.pop %v541
        %v564 = vmul.f32 %v510, %v563
        %v565 = vmul.f32 %v512, %v563
        %v566 = vrcp.pop %v544
        %v567 = vmul.f32 %v514, %v566
        %v568 = vmul.f32 %v516, %v566
        %v569 = vrcp.pop %v547
        %v570 = vmul.f32 %v518, %v569
        %v571 = vmul.f32 %v520, %v569
        %v572 = vrcp.pop %v550
        %v573 = vmul.f32 %v522, %v572
        %v574 = vmul.f32 %v524, %v572
        %v575 = vrcp.pop %v553
        %v576 = vmul.f32 %v526, %v575
        %v577 = vmul.f32 %v528, %v575
        %v578 = vrcp.pop %v556
        %v579 = vmul.f32 %v530, %v578
        %v580 = vmul.f32 %v532, %v578
        %v581 = vsub.f32 %v558, 0.0025
        %v582 = vsub.f32 %v559, 0.0025
        %v583 = vsub.f32 %v561, 0.0025
        %v584 = vsub.f32 %v562, 0.0025
        %v585 = vsub.f32 %v564, 0.0025
        %v586 = vsub.f32 %v565, 0.0025
        %v587 = vsub.f32 %v567, 0.0025
        %v588 = vsub.f32 %v568, 0.0025
        %v589 = vsub.f32 %v570, 0.0025
        %v590 = vsub.f32 %v571, 0.0025
        %v591 = vsub.f32 %v573, 0.0025
        %v592 = vsub.f32 %v574, 0.0025
        %v593 = vsub.f32 %v576, 0.0025
        %v594 = vsub.f32 %v577, 0.0025
        %v595 = vsub.f32 %v579, 0.0025
        %v596 = vsub.f32 %v580, 0.0025
        %v597 = vmax.f32 %v581, 0.0
        %v598 = vmax.f32 %v582, 0.0
        %v599 = vmax.f32 %v583, 0.0
        %v600 = vmax.f32 %v584, 0.0
        %v601 = vmax.f32 %v585, 0.0
        %v602 = vmax.f32 %v586, 0.0
        %v603 = vmax.f32 %v587, 0.0
        %v604 = vmax.f32 %v588, 0.0
        %v605 = vmax.f32 %v589, 0.0
        %v606 = vmax.f32 %v590, 0.0
        %v607 = vmax.f32 %v591, 0.0
        %v608 = vmax.f32 %v592, 0.0
        %v609 = vmax.f32 %v593, 0.0
        %v610 = vmax.f32 %v594, 0.0
        %v611 = vmax.f32 %v595, 0.0
        %v612 = vmax.f32 %v596, 0.0
        %v613 = vmul.f32 %v597, %v558
        %v614 = vmul.f32 %v598, %v559
        %v615 = vmul.f32 %v599, %v561
        %v616 = vmul.f32 %v600, %v562
        %v617 = vmul.f32 %v601, %v564
        %v618 = vmul.f32 %v602, %v565
        %v619 = vmul.f32 %v603, %v567
        %v620 = vmul.f32 %v604, %v568
        %v621 = vmul.f32 %v605, %v570
        %v622 = vmul.f32 %v606, %v571
        %v623 = vmul.f32 %v607, %v573
        %v624 = vmul.f32 %v608, %v574
        %v625 = vmul.f32 %v609, %v576
        %v626 = vmul.f32 %v610, %v577
        %v627 = vmul.f32 %v611, %v579
        %v628 = vmul.f32 %v612, %v580
        %v629 = vand.u32 2147483647, %v581
        %v630 = vand.u32 2147483647, %v582
        %v631 = vand.u32 2147483647, %v583
        %v632 = vand.u32 2147483647, %v584
        %v633 = vand.u32 2147483647, %v585
        %v634 = vand.u32 2147483647, %v586
        %v635 = vand.u32 2147483647, %v587
        %v636 = vand.u32 2147483647, %v588
        %v637 = vand.u32 2147483647, %v589
        %v638 = vand.u32 2147483647, %v590
        %v639 = vand.u32 2147483647, %v591
        %v640 = vand.u32 2147483647, %v592
        %v641 = vand.u32 2147483647, %v593
        %v642 = vand.u32 2147483647, %v594
        %v643 = vand.u32 2147483647, %v595
        %v644 = vand.u32 2147483647, %v596
        %v645 = vadd.f32 %v629, 1e-12
        %v646 = vadd.f32 %v630, 1e-12
        %v647 = vadd.f32 %v631, 1e-12
        %v648 = vadd.f32 %v632, 1e-12
        %v649 = vadd.f32 %v633, 1e-12
        %v650 = vadd.f32 %v634, 1e-12
        %v651 = vadd.f32 %v635, 1e-12
        %v652 = vadd.f32 %v636, 1e-12
        %v653 = vadd.f32 %v637, 1e-12
        %v654 = vadd.f32 %v638, 1e-12
        %v655 = vadd.f32 %v639, 1e-12
        %v656 = vadd.f32 %v640, 1e-12
        %v657 = vadd.f32 %v641, 1e-12
        %v658 = vadd.f32 %v642, 1e-12
        %v659 = vadd.f32 %v643, 1e-12
        %v660 = vadd.f32 %v644, 1e-12
        %v661 = vrcp.pop %v645
        %v662 = vmul.f32 %v613, %v661
        %v663 = vrcp.pop %v646
        %v664 = vmul.f32 %v614, %v663
        %v665 = vrcp.pop %v647
        %v666 = vmul.f32 %v615, %v665
        %v667 = vrcp.pop %v648
        %v668 = vmul.f32 %v616, %v667
        %v669 = vrcp.pop %v649
        %v670 = vmul.f32 %v617, %v669
        %v671 = vrcp.pop %v650
        %v672 = vmul.f32 %v618, %v671
        %v673 = vrcp.pop %v651
        %v674 = vmul.f32 %v619, %v673
        %v675 = vrcp.pop %v652
        %v676 = vmul.f32 %v620, %v675
        %v677 = vrcp.pop %v653
        %v678 = vmul.f32 %v621, %v677
        %v679 = vrcp.pop %v654
        %v680 = vmul.f32 %v622, %v679
        %v681 = vrcp.pop %v655
        %v682 = vmul.f32 %v623, %v681
        %v683 = vrcp.pop %v656
        %v684 = vmul.f32 %v624, %v683
        %v685 = vrcp.pop %v657
        %v686 = vmul.f32 %v625, %v685
        %v687 = vrcp.pop %v658
        %v688 = vmul.f32 %v626, %v687
        %v689 = vrcp.pop %v659
        %v690 = vmul.f32 %v627, %v689
        %v691 = vrcp.pop %v660
        %v692 = vmul.f32 %v628, %v691
        %v693 = vand.u32 2147483647, %v662
        %v694 = vand.u32 2147483647, %v664
        %v695 = vand.u32 2147483647, %v666
        %v696 = vand.u32 2147483647, %v668
        %v697 = vand.u32 2147483647, %v670
        %v698 = vand.u32 2147483647, %v672
        %v699 = vand.u32 2147483647, %v674
        %v700 = vand.u32 2147483647, %v676
        %v701 = vand.u32 2147483647, %v678
        %v702 = vand.u32 2147483647, %v680
        %v703 = vand.u32 2147483647, %v682
        %v704 = vand.u32 2147483647, %v684
        %v705 = vand.u32 2147483647, %v686
        %v706 = vand.u32 2147483647, %v688
        %v707 = vand.u32 2147483647, %v690
        %v708 = vand.u32 2147483647, %v692
        %v709 = vadd.f32 %v693, %v694
        %710 = vadd.xlane.f32.xlu0 %v709
        %v711 = vpop.xlane.xlu0 %710
        %v712 = vadd.f32 %v695, %v696
        %713 = vadd.xlane.f32.xlu0 %v712
        %v714 = vpop.xlane.xlu0 %713
        %v715 = vadd.f32 %v697, %v698
        %716 = vadd.xlane.f32.xlu0 %v715
        %v717 = vpop.xlane.xlu0 %716
        %v718 = vadd.f32 %v699, %v700
        %719 = vadd.xlane.f32.xlu0 %v718
        %v720 = vpop.xlane.xlu0 %719
        %v721 = vadd.f32 %v701, %v702
        %722 = vadd.xlane.f32.xlu0 %v721
        %v723 = vpop.xlane.xlu0 %722
        %v724 = vadd.f32 %v703, %v704
        %725 = vadd.xlane.f32.xlu0 %v724
        %v726 = vpop.xlane.xlu0 %725
        %v727 = vadd.f32 %v705, %v706
        %728 = vadd.xlane.f32.xlu0 %v727
        %v729 = vpop.xlane.xlu0 %728
        %v730 = vadd.f32 %v707, %v708
        %731 = vadd.xlane.f32.xlu0 %v730
        %v732 = vpop.xlane.xlu0 %731
        %v733 = vmax.f32 %v711, 1e-12
        %v734 = vmax.f32 %v714, 1e-12
        %v735 = vmax.f32 %v717, 1e-12
        %v736 = vmax.f32 %v720, 1e-12
        %v737 = vmax.f32 %v723, 1e-12
        %v738 = vmax.f32 %v726, 1e-12
        %v739 = vmax.f32 %v729, 1e-12
        %v740 = vmax.f32 %v732, 1e-12
        %v741 = vrcp.pop %v733
        %v742 = vmul.f32 %v662, %v741
        %v743 = vmul.f32 %v664, %v741
        %v744 = vrcp.pop %v734
        %v745 = vmul.f32 %v666, %v744
        %v746 = vmul.f32 %v668, %v744
        %v747 = vrcp.pop %v735
        %v748 = vmul.f32 %v670, %v747
        %v749 = vmul.f32 %v672, %v747
        %v750 = vrcp.pop %v736
        %v751 = vmul.f32 %v674, %v750
        %v752 = vmul.f32 %v676, %v750
        %v753 = vrcp.pop %v737
        %v754 = vmul.f32 %v678, %v753
        %v755 = vmul.f32 %v680, %v753
        %v756 = vrcp.pop %v738
        %v757 = vmul.f32 %v682, %v756
        %v758 = vmul.f32 %v684, %v756
        %v759 = vrcp.pop %v739
        %v760 = vmul.f32 %v686, %v759
        %v761 = vmul.f32 %v688, %v759
        %v762 = vrcp.pop %v740
        %v763 = vmul.f32 %v690, %v762
        %v764 = vmul.f32 %v692, %v762
        %765 = vst [vmem:[%s255] sm:$0xff] %v742
        %766 = vst [vmem:[%s255 + $0x8] sm:$0xff] %v743
        %767 = vst [vmem:[%s255 + $0x10] sm:$0xff] %v745
        %768 = vst [vmem:[%s255 + $0x18] sm:$0xff] %v746
        %769 = vst [vmem:[%s255 + $0x20] sm:$0xff] %v748
        %770 = vst [vmem:[%s255 + $0x28] sm:$0xff] %v749
        %771 = vst [vmem:[%s255 + $0x30] sm:$0xff] %v751
        %772 = vst [vmem:[%s255 + $0x38] sm:$0xff] %v752
        %773 = vst [vmem:[%s255 + $0x40] sm:$0xff] %v754
        %774 = vst [vmem:[%s255 + $0x48] sm:$0xff] %v755
        %775 = vst [vmem:[%s255 + $0x50] sm:$0xff] %v757
        %776 = vst [vmem:[%s255 + $0x58] sm:$0xff] %v758
        %777 = vst [vmem:[%s255 + $0x60] sm:$0xff] %v760
        %778 = vst [vmem:[%s255 + $0x68] sm:$0xff] %v761
        %779 = vst [vmem:[%s255 + $0x70] sm:$0xff] %v763
        %780 = vst [vmem:[%s255 + $0x78] sm:$0xff] %v764
        %v781 = vpack.c.bf16 %v745, %v742
        %v782 = vpack.c.bf16 %v746, %v743
        %v783 = vpack.c.bf16 %v751, %v748
        %v784 = vpack.c.bf16 %v752, %v749
        %v785 = vpack.c.bf16 %v757, %v754
        %v786 = vpack.c.bf16 %v758, %v755
        %v787 = vpack.c.bf16 %v763, %v760
        %v788 = vpack.c.bf16 %v764, %v761
        %v789 = vld [vmem:[#allocation7] sm:$0xf]
        %v790 = vld [vmem:[#allocation7 + $0x4] sm:$0xf]
        %v791 = vld [vmem:[#allocation7 + $0x8] sm:$0xf]
        %v792 = vld [vmem:[#allocation7 + $0xc] sm:$0xf]
        %v793 = vld [vmem:[#allocation7 + $0x10] sm:$0xf]
        %v794 = vld [vmem:[#allocation7 + $0x14] sm:$0xf]
        %v795 = vld [vmem:[#allocation7 + $0x18] sm:$0xf]
        %v796 = vld [vmem:[#allocation7 + $0x1c] sm:$0xf]
        %v797 = vld [vmem:[#allocation7 + $0x20] sm:$0xf]
        %v798 = vld [vmem:[#allocation7 + $0x24] sm:$0xf]
        %v799 = vld [vmem:[#allocation7 + $0x28] sm:$0xf]
        %v800 = vld [vmem:[#allocation7 + $0x2c] sm:$0xf]
        %v801 = vld [vmem:[#allocation7 + $0x30] sm:$0xf]
        %v802 = vld [vmem:[#allocation7 + $0x34] sm:$0xf]
        %v803 = vld [vmem:[#allocation7 + $0x38] sm:$0xf]
        %v804 = vld [vmem:[#allocation7 + $0x3c] sm:$0xf]
        %v805 = vld [vmem:[#allocation7 + $0x40] sm:$0xf]
        %v806 = vld [vmem:[#allocation7 + $0x44] sm:$0xf]
        %v807 = vld [vmem:[#allocation7 + $0x48] sm:$0xf]
        %v808 = vld [vmem:[#allocation7 + $0x4c] sm:$0xf]
        %v809 = vld [vmem:[#allocation7 + $0x50] sm:$0xf]
        %v810 = vld [vmem:[#allocation7 + $0x54] sm:$0xf]
        %v811 = vld [vmem:[#allocation7 + $0x58] sm:$0xf]
        %v812 = vld [vmem:[#allocation7 + $0x5c] sm:$0xf]
        %v813 = vld [vmem:[#allocation7 + $0x60] sm:$0xf]
        %v814 = vld [vmem:[#allocation7 + $0x64] sm:$0xf]
        %v815 = vld [vmem:[#allocation7 + $0x68] sm:$0xf]
        %v816 = vld [vmem:[#allocation7 + $0x6c] sm:$0xf]
        %v817 = vld [vmem:[#allocation7 + $0x70] sm:$0xf]
        %v818 = vld [vmem:[#allocation7 + $0x74] sm:$0xf]
        %v819 = vld [vmem:[#allocation7 + $0x78] sm:$0xf]
        %v820 = vld [vmem:[#allocation7 + $0x7c] sm:$0xf]
        %v853 = vunpack.c.l.b16 %v789
        %v854 = vunpack.c.l.b16 %v790
        %v855 = vunpack.c.l.b16 %v791
        %v856 = vunpack.c.l.b16 %v792
        %v857 = vunpack.c.l.b16 %v793
        %v858 = vunpack.c.l.b16 %v794
        %v859 = vunpack.c.l.b16 %v795
        %v860 = vunpack.c.l.b16 %v796
        %v861 = vunpack.c.l.b16 %v797
        %v862 = vunpack.c.l.b16 %v798
        %v863 = vunpack.c.l.b16 %v799
        %v864 = vunpack.c.l.b16 %v800
        %v865 = vunpack.c.l.b16 %v801
        %v866 = vunpack.c.l.b16 %v802
        %v867 = vunpack.c.l.b16 %v803
        %v868 = vunpack.c.l.b16 %v804
        %v869 = vunpack.c.l.b16 %v805
        %v870 = vunpack.c.l.b16 %v806
        %v871 = vunpack.c.l.b16 %v807
        %v872 = vunpack.c.l.b16 %v808
        %v873 = vunpack.c.l.b16 %v809
        %v874 = vunpack.c.l.b16 %v810
        %v875 = vunpack.c.l.b16 %v811
        %v876 = vunpack.c.l.b16 %v812
        %v877 = vunpack.c.l.b16 %v813
        %v878 = vunpack.c.l.b16 %v814
        %v879 = vunpack.c.l.b16 %v815
        %v880 = vunpack.c.l.b16 %v816
        %v881 = vunpack.c.l.b16 %v817
        %v882 = vunpack.c.l.b16 %v818
        %v883 = vunpack.c.l.b16 %v819
        %v884 = vunpack.c.l.b16 %v820
        %v885 = vpack.c.b16 %v854, %v853
        %v886 = vpack.c.b16 %v856, %v855
        %v887 = vpack.c.b16 %v858, %v857
        %v888 = vpack.c.b16 %v860, %v859
        %v889 = vpack.c.b16 %v862, %v861
        %v890 = vpack.c.b16 %v864, %v863
        %v891 = vpack.c.b16 %v866, %v865
        %v892 = vpack.c.b16 %v868, %v867
        %v893 = vpack.c.b16 %v870, %v869
        %v894 = vpack.c.b16 %v872, %v871
        %v895 = vpack.c.b16 %v874, %v873
        %v896 = vpack.c.b16 %v876, %v875
        %v897 = vpack.c.b16 %v878, %v877
        %v898 = vpack.c.b16 %v880, %v879
        %v899 = vpack.c.b16 %v882, %v881
        %v900 = vpack.c.b16 %v884, %v883
        %917 = vmatprep.subr.bf16.mxu0 0
        %918 = vmatpush1.bf16.msra.mxu0 %v892
        %919 = vmatprep.subr.bf16.mxu0 0
        %920 = vmatpush1.bf16.msra.mxu0 %v891
        %921 = vmatprep.subr.bf16.mxu0 0
        %922 = vmatpush1.bf16.msra.mxu0 %v890
        %923 = vmatprep.subr.bf16.mxu0 0
        %924 = vmatpush1.bf16.msra.mxu0 %v889
        %925 = vmatprep.subr.bf16.mxu0 0
        %926 = vmatpush1.bf16.msra.mxu0 %v888
        %927 = vmatprep.subr.bf16.mxu0 0
        %928 = vmatpush1.bf16.msra.mxu0 %v887
        %929 = vmatprep.subr.bf16.mxu0 0
        %930 = vmatpush1.bf16.msra.mxu0 %v886
        %931 = vmatprep.subr.bf16.mxu0 0
        %932 = vmatpush1.bf16.msra.mxu0 %v885
        %933 = vmatprep.subr.bf16.mxu0 0
        %934 = vmatpush2.bf16.msra.mxu0 %v900
        %935 = vmatprep.subr.bf16.mxu0 0
        %936 = vmatpush2.bf16.msra.mxu0 %v899
        %937 = vmatprep.subr.bf16.mxu0 0
        %938 = vmatpush2.bf16.msra.mxu0 %v898
        %939 = vmatprep.subr.bf16.mxu0 0
        %940 = vmatpush2.bf16.msra.mxu0 %v897
        %941 = vmatprep.subr.bf16.mxu0 0
        %942 = vmatpush2.bf16.msra.mxu0 %v896
        %943 = vmatprep.subr.bf16.mxu0 0
        %944 = vmatpush2.bf16.msra.mxu0 %v895
        %945 = vmatprep.subr.bf16.mxu0 0
        %946 = vmatpush2.bf16.msra.mxu0 %v894
        %947 = vmatprep.subr.bf16.mxu0 0
        %948 = vmatpush2.bf16.msra.mxu0 %v893
        %949 = vmatprep.mubr.bf16.mxu0 %v782
        %950 = vmatmul.mubr.bf16.gmra.mxu0 %v781
        %v951 = vpop.f32.mrf.mxu0
        %v952 = vadd.f32 0.0, %v951
        %v953 = vpop.f32.mrf.mxu0
        %v954 = vpop.f32.mrf.mxu0
        %v955 = vadd.f32 0.0, %v954
        %v956 = vpop.f32.mrf.mxu0
        %957 = vmatprep.mubr.bf16.mxu0 %v784
        %958 = vmatmul.mubr.bf16.gmra.mxu0 %v783
        %v959 = vpop.f32.mrf.mxu0
        %v960 = vadd.f32 0.0, %v959
        %v961 = vpop.f32.mrf.mxu0
        %v962 = vpop.f32.mrf.mxu0
        %v963 = vadd.f32 0.0, %v962
        %v964 = vpop.f32.mrf.mxu0
        %965 = vmatprep.mubr.bf16.mxu0 %v786
        %966 = vmatmul.mubr.bf16.gmra.mxu0 %v785
        %v967 = vpop.f32.mrf.mxu0
        %v968 = vadd.f32 0.0, %v967
        %v969 = vpop.f32.mrf.mxu0
        %v970 = vpop.f32.mrf.mxu0
        %v971 = vadd.f32 0.0, %v970
        %v972 = vpop.f32.mrf.mxu0
        %973 = vmatprep.mubr.bf16.mxu0 %v788
        %974 = vmatmul.mubr.bf16.gmra.mxu0 %v787
        %v975 = vpop.f32.mrf.mxu0
        %v976 = vadd.f32 0.0, %v975
        %v977 = vpop.f32.mrf.mxu0
        %v978 = vpop.f32.mrf.mxu0
        %v979 = vadd.f32 0.0, %v978
        %v980 = vpop.f32.mrf.mxu0
        %981 = vdwg.mxu0
        %982 = vst [vmem:[%s248] sm:$0xff] %v952
        %983 = vst [vmem:[%s248 + $0x8] sm:$0xff] %v955
        %984 = vst [vmem:[%s248 + $0x10] sm:$0xff] %v960
        %985 = vst [vmem:[%s248 + $0x18] sm:$0xff] %v963
        %986 = vst [vmem:[%s248 + $0x20] sm:$0xff] %v968
        %987 = vst [vmem:[%s248 + $0x28] sm:$0xff] %v971
        %988 = vst [vmem:[%s248 + $0x30] sm:$0xff] %v976
        %989 = vst [vmem:[%s248 + $0x38] sm:$0xff] %v979
        %s990 = sand.u32 %s102, 1
        %s991 = scalar_lea.sflag [#allocation4], %s990
        %s992 = sand.u32 %s102, 1
        %s993 = smul.addr %s992, 64
        %s994 = scalar_lea.vmem [#allocation8], %s993
        %s995 = sand.u32 %s128, 1
        %s996 = scalar_lea.sflag [#allocation10], %s995
        %s997 = sand.u32 %s128, 1
        %s998 = smul.addr %s997, 128
        %s999 = scalar_lea.vmem [#allocation9], %s998
        // Predicated region
        $region45: #{tpu_custom_call.1} parent=31 // pred_check
          %p1000 = pneg %p112
        $region46: #{tpu_custom_call.1} parent=31 // pred_check_branch
          %1002 = sbr.rel (%p1000) target = $region48
        $region47: #{tpu_custom_call.1} parent=31 // pred_region
          %s1003 = smul.u32 8, %s26
          %s1005 = ssub.s32 1024, 1024
          %1006 = vsyncadd %s991, %s1005
          %s1007 = smul.addr %s1003, 128
          %s1008 = scalar_lea.hbm %s3, %s1007
          %s1009 = sshll.u32 %s994, 4
          %s1010 = int_to_ptr.vmem [resolvable:$true] %s1009
          %1015 = dma.vmem_to_hbm [thread:$0]  %s1010, 1024, %s1008, %s991, 128, 128, 8
        $region48: #{tpu_custom_call.1} parent=31 // pred_fallthru
          _
        // Predicated region
        $region49: #{tpu_custom_call.1} parent=31 // pred_check
          %p1016 = pneg %p138
        $region50: #{tpu_custom_call.1} parent=31 // pred_check_branch
          %1018 = sbr.rel (%p1016) target = $region52
        $region51: #{tpu_custom_call.1} parent=31 // pred_region
          %s1019 = smul.u32 8, %s26
          %s1021 = ssub.s32 2048, 2048
          %1022 = vsyncadd %s996, %s1021
          %s1023 = smul.addr %s1019, 2
          %s1024 = smul.addr %s1023, 128
          %s1025 = scalar_lea.hbm %s4, %s1024
          %s1026 = sshll.u32 %s999, 4
          %s1027 = int_to_ptr.vmem [resolvable:$true] %s1026
          %1032 = dma.vmem_to_hbm [thread:$0]  %s1027, 2048, %s1025, %s996, 256, 256, 16
        $region52: #{tpu_custom_call.1} parent=31 // pred_fallthru
          _
      $region32: #{tpu_custom_call.1} parent=5 // pred_fallthru
        _
      %p1033 = scmp.le.s32.totalorder 2, %s21
      // Predicated region
      $region53: #{tpu_custom_call.1} parent=5 // pred_check
        %p1034 = pneg %p1033
      $region54: #{tpu_custom_call.1} parent=5 // pred_check_branch
        %1036 = sbr.rel (%p1034) target = $region56
      $region55: #{tpu_custom_call.1} parent=5 // pred_region
        %s1037 = ssub.s32 %s21, 2
        // Predicated region
        $region57: #{tpu_custom_call.1} parent=55 // pred_check
          %p1038 = pneg %p118
        $region58: #{tpu_custom_call.1} parent=55 // pred_check_branch
          %1040 = sbr.rel (%p1038) target = $region60
        $region59: #{tpu_custom_call.1} parent=55 // pred_region
          %s1041 = sand.u32 %s103, 1
          %s1042 = scalar_lea.sflag [#allocation4], %s1041
          %s1043 = sand.u32 %s103, 1
          %s1044 = smul.addr %s1043, 64
          %s1045 = scalar_lea.vmem [#allocation8], %s1044
          %1046 = dma.done %s1042, 1024
        $region60: #{tpu_custom_call.1} parent=55 // pred_fallthru
          _
        // Predicated region
        $region61: #{tpu_custom_call.1} parent=55 // pred_check
          %p1047 = pneg %p144
        $region62: #{tpu_custom_call.1} parent=55 // pred_check_branch
          %1049 = sbr.rel (%p1047) target = $region64
        $region63: #{tpu_custom_call.1} parent=55 // pred_region
          %s1050 = sand.u32 %s129, 1
          %s1051 = scalar_lea.sflag [#allocation10], %s1050
          %s1052 = sand.u32 %s129, 1
          %s1053 = smul.addr %s1052, 128
          %s1054 = scalar_lea.vmem [#allocation9], %s1053
          %1055 = dma.done %s1051, 2048
        $region64: #{tpu_custom_call.1} parent=55 // pred_fallthru
          _
      $region56: #{tpu_custom_call.1} parent=5 // pred_fallthru
        _
    $region6: #{tpu_custom_call.1} parent=1 // loop_footer
      %s25 = sadd.s32 1, %s21
    $region7: #{tpu_custom_call.1} parent=1 // loop_footer_branch
      %20 = sbr.rel target = $region3
    $region8: #{tpu_custom_call.1} parent=1 // loop_exit
      _
    %1056 = vsyncpa [#allocation3], 1
    %s1057 = scalar_lea.sflag [#allocation3], 1
    %1058 = vsyncpa %s1057, 1
    %1059 = vsyncpa [#allocation6], 1
    %1060 = vsyncpa [#allocation4], 1
    %s1061 = scalar_lea.sflag [#allocation4], 1
    %1062 = vsyncpa %s1061, 1
    %1063 = vsyncpa [#allocation10], 1
    %s1064 = scalar_lea.sflag [#allocation10], 1
    %1065 = vsyncpa %s1064, 1

</llo_original>
